<compile_context>
chip_gen: v6e
topology: v6e:2x2x1
jax: 0.10.0
libtpu: 0.0.40
codegen_flags: <defaults>
</compile_context>

<pallas_src>
import functools

import jax
import jax.numpy as jnp
from jax.experimental import pallas as pl
from jax.experimental.pallas import tpu as pltpu

LANE = 128
_TARGET_BLOCK_BYTES = 2 * 1024 * 1024   # 2 MiB per buffer (portable v5e..v7x)
_VMEM_LIMIT_BYTES = 32 * 1024 * 1024    # covers in+out double buffering + slack


def _sublane_min(dtype) -> int:
    # Packed-tile sublane minimum: 8 for 4-byte, 16 for 2-byte, 32 for 1-byte.
    return max(8, 32 // jnp.dtype(dtype).itemsize)


def _round_up(x: int, m: int) -> int:
    return ((x + m - 1) // m) * m


def _xplor_kernel(r_ref, o_ref, *, r_on, rc_sq, lin_c, inv_denom):
    # Compute in f32 regardless of storage dtype (squaring r in bf16 loses
    # precision near r ~ r_cut); cast only the final result.
    r = r_ref[...].astype(jnp.float32)
    u = r * r
    diff = rc_sq - u
    # (rc^2 - r^2)^2 * (2 r^2 + (rc^2 - 3 r_on^2)) * 1/(rc^2 - r_on^2)^3
    smooth = (diff * diff) * (2.0 * u + lin_c) * inv_denom
    # TODO(synk): like the PyTorch module, values for r >= r_cut are NOT clamped to 0.
    o_ref[...] = jnp.where(r < r_on, 1.0, smooth).astype(o_ref.dtype)


def xplor_cutoff(r: jax.Array, cutoff_length: float, cutoff_on: float,
                 *, rows_per_block: int | None = None) -> jax.Array:
    """Pallas TPU implementation of XPLORCutoff.forward (any input shape)."""
    assert cutoff_on < cutoff_length
    orig_shape = r.shape
    r_flat = r.reshape(-1)
    n = r_flat.shape[0]
    if n == 0:
        return r

    sub = _sublane_min(r.dtype)
    itemsize = jnp.dtype(r.dtype).itemsize

    # Pad to whole 128-lane rows, then view as a lane-dense (rows, 128) slab.
    n_pad = _round_up(n, LANE)
    if n_pad != n:
        r_flat = jnp.pad(r_flat, (0, n_pad - n))
    rows = n_pad // LANE
    r2d = r_flat.reshape(rows, LANE)

    if rows_per_block is None:
        max_rows = max(sub, _TARGET_BLOCK_BYTES // (LANE * itemsize))
        # Cap at ~half the work (sublane-aligned) so the grid has >= 2 steps
        # whenever possible -> both v7x TensorCores get blocks.
        half_rows = _round_up(pl.cdiv(rows, 2), sub)
        rows_per_block = min(max_rows, max(sub, half_rows))
    assert rows_per_block % sub == 0, "rows_per_block must be sublane-aligned"

    grid = pl.cdiv(rows, rows_per_block)

    # Fold all scalar math into Python-float constants (no per-element divide).
    rc_sq = float(cutoff_length) ** 2
    ron_sq = float(cutoff_on) ** 2
    lin_c = rc_sq - 3.0 * ron_sq
    inv_denom = 1.0 / (rc_sq - ron_sq) ** 3

    kernel = functools.partial(
        _xplor_kernel,
        r_on=float(cutoff_on), rc_sq=rc_sq, lin_c=lin_c, inv_denom=inv_denom,
    )

    out2d = pl.pallas_call(
        kernel,
        out_shape=jax.ShapeDtypeStruct((rows, LANE), r.dtype),
        grid=(grid,),
        in_specs=[pl.BlockSpec((rows_per_block, LANE), lambda i: (i, 0))],
        out_specs=pl.BlockSpec((rows_per_block, LANE), lambda i: (i, 0)),
        compiler_params=pltpu.CompilerParams(
            dimension_semantics=("parallel",),
            vmem_limit_bytes=_VMEM_LIMIT_BYTES),
    )(r2d)

    out = out2d.reshape(-1)
    if n_pad != n:
        out = out[:n]
    return out.reshape(orig_shape)


def _reference(r, r_cut, r_on):
    r32 = r.astype(jnp.float32)
    r_sq = r32 * r32
    r_on_sq = r_on * r_on
    r_cut_sq = r_cut * r_cut
    res = jnp.where(
        r32 < r_on,
        1.0,
        (r_cut_sq - r_sq) ** 2 * (r_cut_sq + 2 * r_sq - 3 * r_on_sq)
        / (r_cut_sq - r_on_sq) ** 3,
    )
    return res.astype(r.dtype)


if __name__ == "__main__":
    key = jax.random.PRNGKey(0)
    r_cut, r_on = 5.0, 4.0

    # Case 1: default block sizing, n not a multiple of 128 (padded tail).
    num_edges = 1000
    r1 = jax.random.uniform(key, (num_edges,), dtype=jnp.float32,
                            minval=0.0, maxval=6.0)
    out1 = jax.block_until_ready(xplor_cutoff(r1, r_cut, r_on))
    ref1 = _reference(r1, r_cut, r_on)
    assert out1.shape == r1.shape and out1.dtype == r1.dtype
    assert jnp.allclose(out1, ref1, rtol=1e-5, atol=1e-6), "mismatch (case 1)"

    # Case 2: multi-block grid with a masked partial tail block (33 rows, 8/block).
    key2 = jax.random.fold_in(key, 1)
    r2 = jax.random.uniform(key2, (4200,), dtype=jnp.float32,
                            minval=0.0, maxval=6.0)
    out2 = jax.block_until_ready(xplor_cutoff(r2, r_cut, r_on, rows_per_block=8))
    ref2 = _reference(r2, r_cut, r_on)
    assert out2.shape == r2.shape
    assert jnp.allclose(out2, ref2, rtol=1e-5, atol=1e-6), "mismatch (case 2)"

    # Case 3: bf16 storage (16-sublane tiles), f32 compute inside the kernel.
    key3 = jax.random.fold_in(key, 2)
    r3 = jax.random.uniform(key3, (3000,), dtype=jnp.float32,
                            minval=0.0, maxval=6.0).astype(jnp.bfloat16)
    out3 = jax.block_until_ready(xplor_cutoff(r3, r_cut, r_on))
    ref3 = _reference(r3, r_cut, r_on)
    assert out3.shape == r3.shape and out3.dtype == jnp.bfloat16
    assert jnp.allclose(out3.astype(jnp.float32), ref3.astype(jnp.float32),
                        rtol=2e-2, atol=2e-2), "mismatch (case 3)"

    print("KERNEL_OK")
</pallas_src>

<mosaic_0001>
module attributes {stable_mosaic.version = 11 : i64} {
  func.func @_xplor_kernel(%arg0: i32, %arg1: memref<8x128xf32, #tpu.memory_space<vmem>>, %arg2: memref<8x128xf32, #tpu.memory_space<vmem>>) attributes {dimension_semantics = [#tpu.dimension_semantics<parallel>], iteration_bounds = array<i64: 1>, scalar_prefetch = 0 : i64, scratch_operands = 0 : i64, tpu.core_type = #tpu.core_type<tc>, window_params = [{transform_indices = @transform_0, window_bounds = array<i64: 8, 128>}, {transform_indices = @transform_1, window_bounds = array<i64: 8, 128>}]} {
    %c0 = arith.constant 0 : index
    %c0_0 = arith.constant 0 : index
    %0 = vector.load %arg1[%c0, %c0_0] : memref<8x128xf32, #tpu.memory_space<vmem>>, vector<8x128xf32>
    %1 = arith.mulf %0, %0 : vector<8x128xf32>
    %cst = arith.constant 2.500000e+01 : f32
    %2 = vector.broadcast %cst : f32 to vector<8x128xf32>
    %3 = arith.subf %2, %1 : vector<8x128xf32>
    %4 = arith.mulf %3, %3 : vector<8x128xf32>
    %cst_1 = arith.constant 2.000000e+00 : f32
    %5 = vector.broadcast %cst_1 : f32 to vector<8x128xf32>
    %6 = arith.mulf %5, %1 : vector<8x128xf32>
    %cst_2 = arith.constant -2.300000e+01 : f32
    %7 = vector.broadcast %cst_2 : f32 to vector<8x128xf32>
    %8 = arith.addf %6, %7 : vector<8x128xf32>
    %9 = arith.mulf %4, %8 : vector<8x128xf32>
    %cst_3 = arith.constant 0.00137174211 : f32
    %10 = vector.broadcast %cst_3 : f32 to vector<8x128xf32>
    %11 = arith.mulf %9, %10 : vector<8x128xf32>
    %cst_4 = arith.constant 4.000000e+00 : f32
    %12 = vector.broadcast %cst_4 : f32 to vector<8x128xf32>
    %13 = arith.cmpf olt, %0, %12 : vector<8x128xf32>
    %cst_5 = arith.constant 1.000000e+00 : f32
    %14 = vector.broadcast %cst_5 : f32 to vector<8x128xf32>
    %15 = arith.select %13, %14, %11 : vector<8x128xi1>, vector<8x128xf32>
    %c0_6 = arith.constant 0 : index
    %c0_7 = arith.constant 0 : index
    %16 = vector.load %arg2[%c0_6, %c0_7] : memref<8x128xf32, #tpu.memory_space<vmem>>, vector<8x128xf32>
    tpu.vector_store %arg2[%c0_6, %c0_7], %15 {strides = array<i32>} : memref<8x128xf32, #tpu.memory_space<vmem>>, vector<8x128xf32>,
    return
  }
  func.func @transform_0(%arg0: i32) -> (i32, i32) {
    %c0_i32 = arith.constant 0 : i32
    %c0_i32_0 = arith.constant 0 : i32
    return %arg0, %c0_i32 : i32, i32
  }
  func.func @transform_1(%arg0: i32) -> (i32, i32) {
    %c0_i32 = arith.constant 0 : i32
    %c0_i32_0 = arith.constant 0 : i32
    return %arg0, %c0_i32 : i32, i32
  }
}

</mosaic_0001>

<llo_original>
// kernel: tpu_custom_call.1
$region0: #{tpu_custom_call.1}
  #allocation0 [shape = 'u32[]', space=smem, size = 0x4, offset = 0x4, fixed_abs, tag = 'smem constant byte address 0x4 - core index']
  #allocation1 [shape = 'u32[144,128]{1,0:T(1,128)}', space=vmem, size = 0x12000, scoped, tag = 'internal scratch']
  %s0 = inlined_call_operand.hbm [shape: f32[8,128], index: 0, kind: input, shape index: {}]
  %s1 = inlined_call_operand.hbm [shape: f32[8,128], index: 1, kind: output, shape index: {}]
  %s2 = sld [smem:[#allocation0]]
  $region18: #{tpu_custom_call.1} parent=0
    _
  %s4 = ssub.s32 1, %s2
  %s5 = scalar_select 0, %s4, %s2
  $region1: #{tpu_custom_call.1} parent=0
    #allocation2 [shape = 'u8[4096]{0}', space=vmem, size = 0x1000, scoped, tag = 'input window, operand 0, single buffered']
    #allocation3 [shape = 's32[1]{0}', space=sflag, size = 0x4, scoped, tag = 'scoped memory for tpu_custom_call.1']
    #allocation4 [shape = 's32[1]{0}', space=sflag, size = 0x4, scoped, tag = 'scoped memory for tpu_custom_call.1']
    #allocation5 [shape = 'u8[4096]{0}', space=vmem, size = 0x1000, scoped, tag = 'output window, operand 0, single buffered']
    %6 = vsyncpa [#allocation3], 0
    %7 = vsyncpa [#allocation4], 0
    // Predicated region
    $region2: #{tpu_custom_call.1} parent=1 // pred_check
      _
    $region3: #{tpu_custom_call.1} parent=1 // pred_check_branch
      %9 = sbr.rel (0) target = $region5
    $region4: #{tpu_custom_call.1} parent=1 // pred_region
      %s11 = ssub.s32 128, 128
      %12 = vsyncadd [#allocation3], %s11
      %s14 = sshll.u32 [#allocation2], 4
      %s15 = int_to_ptr.vmem [resolvable:$true] %s14
      %17 = dma.hbm_to_vmem [thread:$0]  %s0, 128, %s15, [#allocation3]
    $region5: #{tpu_custom_call.1} parent=1 // pred_fallthru
      _
    // Predicated region
    $region6: #{tpu_custom_call.1} parent=1 // pred_check
      _
    $region7: #{tpu_custom_call.1} parent=1 // pred_check_branch
      %19 = sbr.rel (0) target = $region9
    $region8: #{tpu_custom_call.1} parent=1 // pred_region
      %20 = dma.done [#allocation3], 128
    $region9: #{tpu_custom_call.1} parent=1 // pred_fallthru
      _
    %v21 = vld [vmem:[#allocation2] sm:$0xff]
    %v22 = vmul.f32 %v21, %v21
    %v23 = vsub.f32 25.0, %v22
    %v24 = vmul.f32 %v23, %v23
    %v25 = vmul.f32 %v22, 2.0
    %v26 = vadd.f32 %v25, -23.0
    %v27 = vmul.f32 %v24, %v26
    %v28 = vmul.f32 %v27, 0.0013717421
    %vm29 = vcmp.lt.f32.partialorder %v21, 4.0
    %v30 = vsel %vm29, 1.0, %v28
    %31 = vst [vmem:[#allocation5] sm:$0xff] %v30
    // Predicated region
    $region10: #{tpu_custom_call.1} parent=1 // pred_check
      _
    $region11: #{tpu_custom_call.1} parent=1 // pred_check_branch
      %33 = sbr.rel (0) target = $region13
    $region12: #{tpu_custom_call.1} parent=1 // pred_region
      %s35 = ssub.s32 128, 128
      %36 = vsyncadd [#allocation4], %s35
      %s38 = sshll.u32 [#allocation5], 4
      %s39 = int_to_ptr.vmem [resolvable:$true] %s38
      %41 = dma.vmem_to_hbm [thread:$0]  %s39, 128, %s1, [#allocation4]
    $region13: #{tpu_custom_call.1} parent=1 // pred_fallthru
      _
    // Predicated region
    $region14: #{tpu_custom_call.1} parent=1 // pred_check
      _
    $region15: #{tpu_custom_call.1} parent=1 // pred_check_branch
      %43 = sbr.rel (0) target = $region17
    $region16: #{tpu_custom_call.1} parent=1 // pred_region
      %44 = dma.done [#allocation4], 128
    $region17: #{tpu_custom_call.1} parent=1 // pred_fallthru
      _
    %45 = vsyncpa [#allocation3], 1
    %46 = vsyncpa [#allocation4], 1

</llo_original>
